<compile_context>
chip_gen: v5e
topology: v5e:2x2
jax: 0.10.0
libtpu: 0.0.40
codegen_flags: <defaults>
</compile_context>

<pallas_src>
import jax
import jax.numpy as jnp
from jax.experimental import pallas as pl
from jax.experimental.pallas import tpu as pltpu

HIDDEN_LAYERS_DQN = 128
_SUBLANE = 8
_DEFAULT_TILE_B = 1024            # larger batch tile amortizes per-step grid overhead
_SINGLE_BLOCK_MAX_B = 32          # batches <= this stay a single block (env-step path)
_VMEM_BUDGET = 48 * 1024 * 1024   # stay well inside v7x's 64 MiB physical VMEM
_DEFAULT_SCOPED_VMEM = 14 * 1024 * 1024  # below v5e's 16 MiB default scoped limit


def _round_up(n, m):
    return (n + m - 1) // m * m


def _cdiv(a, b):
    return (a + b - 1) // b


def _qnetwork_kernel(x_ref, w1_ref, b1_ref, w2_ref, b2_ref, w3_ref, b3_ref, o_ref):
    # Fused fc1->relu->fc2->relu->fc3; intermediates never leave VMEM.
    # bf16 MXU operands, f32 accumulation, f32 bias add / ReLU.
    x = x_ref[...].astype(jnp.bfloat16)
    h1 = jnp.dot(x, w1_ref[...], preferred_element_type=jnp.float32) + b1_ref[...]
    h1 = jnp.maximum(h1, 0.0).astype(jnp.bfloat16)
    h2 = jnp.dot(h1, w2_ref[...], preferred_element_type=jnp.float32) + b2_ref[...]
    h2 = jnp.maximum(h2, 0.0).astype(jnp.bfloat16)
    out = jnp.dot(h2, w3_ref[...], preferred_element_type=jnp.float32) + b3_ref[...]
    o_ref[...] = out.astype(o_ref.dtype)


def _vmem_bytes(tb, in_size, hidden, out_size):
    """Rough per-call VMEM footprint: double-buffered x/out tiles, double-buffered
    bf16 weights (constant blocks), f32 biases, in-kernel f32/bf16 intermediates."""
    x_tile = 2 * tb * in_size * 4
    out_tile = 2 * tb * out_size * 4
    weights = 2 * 2 * (in_size * hidden + hidden * hidden + hidden * out_size)
    biases = 2 * 4 * (2 * hidden + out_size)
    interm = 4 * tb * hidden * 4
    return x_tile + out_tile + weights + biases + interm


def _select_tile_b(batch, tile_b):
    """One block for tiny batches; otherwise >= 2 blocks so the "parallel" grid
    axis can actually shard across v7x's two TensorCores. Prefers tiles that
    divide common (power-of-two) batch sizes exactly, avoiding a batch pad."""
    if batch <= max(_SUBLANE, min(tile_b, _SINGLE_BLOCK_MAX_B)):
        return _round_up(batch, _SUBLANE)
    return min(tile_b, _round_up(_cdiv(batch, 2), _SUBLANE))


def qnetwork_forward(x, params, tile_b=_DEFAULT_TILE_B):
    """x: (batch, input_size) float32. params: dict of w1,b1,w2,b2,w3,b3
    (weights stored (in_features, out_features), biases (1, out_features))."""
    w1, b1 = params["w1"], params["b1"]
    w2, b2 = params["w2"], params["b2"]
    w3, b3 = params["w3"], params["b3"]

    batch, in_size = x.shape
    hidden = w1.shape[1]
    out_size = w3.shape[1]

    # bf16 MXU operands (f32 accumulation in-kernel); one-time cheap host cast.
    w1 = w1.astype(jnp.bfloat16)
    w2 = w2.astype(jnp.bfloat16)
    w3 = w3.astype(jnp.bfloat16)
    b1 = b1.astype(jnp.float32)
    b2 = b2.astype(jnp.float32)
    b3 = b3.astype(jnp.float32)

    # --- Batch tile selection + VMEM guard ---
    tb = _select_tile_b(batch, tile_b)
    while tb > _SUBLANE and _vmem_bytes(tb, in_size, hidden, out_size) > _VMEM_BUDGET:
        tb = _round_up(tb // 2, _SUBLANE)
    # TODO(synk): for very large input_size (e.g. flattened image observations)
    # w1 alone can exceed VMEM; that needs a K-tiling reduction grid axis with an
    # f32 accumulator, not just a smaller batch tile.

    b_pad = _round_up(batch, tb)
    if b_pad != batch:
        x = jnp.pad(x, ((0, b_pad - batch), (0, 0)))
    grid = (b_pad // tb,)

    vmem_est = _vmem_bytes(tb, in_size, hidden, out_size)
    cp_kwargs = dict(dimension_semantics=("parallel",))  # shards tiles across TCs on v7x
    if vmem_est > _DEFAULT_SCOPED_VMEM:
        cp_kwargs["vmem_limit_bytes"] = int(min(vmem_est * 3 // 2,
                                                _VMEM_BUDGET + (8 << 20)))

    # Advisory cost estimate (unpadded x/out, bf16 weights -> accurate numbers).
    flops = 2 * b_pad * (in_size * hidden + hidden * hidden + hidden * out_size)
    bytes_accessed = (
        4 * b_pad * in_size                                         # x (f32)
        + 2 * (in_size * hidden + hidden * hidden + hidden * out_size)  # weights (bf16)
        + 4 * (2 * hidden + out_size)                               # biases (f32)
        + 4 * b_pad * out_size                                      # output (f32)
    )
    cost = pl.CostEstimate(flops=flops, transcendentals=0, bytes_accessed=bytes_accessed)

    def const_spec(shape):
        # Same block every grid step -> DMA'd once, VMEM-resident across iterations.
        return pl.BlockSpec(shape, lambda i: (0, 0))

    out = pl.pallas_call(
        _qnetwork_kernel,
        out_shape=jax.ShapeDtypeStruct((b_pad, out_size), jnp.float32),
        grid_spec=pltpu.PrefetchScalarGridSpec(
            num_scalar_prefetch=0,
            grid=grid,
            in_specs=[
                # x: tiled over batch; last dim == full array dim (no lane padding).
                pl.BlockSpec((tb, in_size), lambda i: (i, 0)),
                const_spec((in_size, hidden)), const_spec((1, hidden)),
                const_spec((hidden, hidden)), const_spec((1, hidden)),
                const_spec((hidden, out_size)), const_spec((1, out_size)),
            ],
            # Narrow (tb, out_size) output blocks: masked stores, but far fewer
            # HBM write bytes than padding to 128 lanes, and no post-kernel
            # feature-dim slice pass.
            out_specs=pl.BlockSpec((tb, out_size), lambda i: (i, 0)),
        ),
        compiler_params=pltpu.CompilerParams(**cp_kwargs),
        cost_estimate=cost,
    )(x, w1, b1, w2, b2, w3, b3)

    if b_pad != batch:
        out = out[:batch]
    return out


def init_qnetwork_params(key, input_size, output_size, hidden=HIDDEN_LAYERS_DQN):
    """Deterministic init mimicking torch.nn.Linear's U(-1/sqrt(fan_in), 1/sqrt(fan_in))."""
    keys = jax.random.split(key, 6)

    def linear(kw, kb, fan_in, fan_out):
        bound = 1.0 / jnp.sqrt(jnp.float32(fan_in))
        w = jax.random.uniform(kw, (fan_in, fan_out), jnp.float32, -bound, bound)
        b = jax.random.uniform(kb, (1, fan_out), jnp.float32, -bound, bound)
        return w, b

    w1, b1 = linear(keys[0], keys[1], input_size, hidden)
    w2, b2 = linear(keys[2], keys[3], hidden, hidden)
    w3, b3 = linear(keys[4], keys[5], hidden, output_size)
    return {"w1": w1, "b1": b1, "w2": w2, "b2": b2, "w3": w3, "b3": b3}


def qnetwork_ref_f32(x, p):
    """Pure-JAX f32 reference (PyTorch forward semantics)."""
    h1 = jnp.maximum(x @ p["w1"] + p["b1"], 0.0)
    h2 = jnp.maximum(h1 @ p["w2"] + p["b2"], 0.0)
    return h2 @ p["w3"] + p["b3"]


def qnetwork_ref_bf16(x, p):
    """Reference with the same bf16-operand / f32-accumulate scheme as the kernel."""
    bf = jnp.bfloat16
    h1 = jnp.maximum(
        jnp.dot(x.astype(bf), p["w1"].astype(bf), preferred_element_type=jnp.float32)
        + p["b1"], 0.0)
    h2 = jnp.maximum(
        jnp.dot(h1.astype(bf), p["w2"].astype(bf), preferred_element_type=jnp.float32)
        + p["b2"], 0.0)
    return (jnp.dot(h2.astype(bf), p["w3"].astype(bf), preferred_element_type=jnp.float32)
            + p["b3"])


if __name__ == "__main__":
    key = jax.random.PRNGKey(0)
    k_params, k_x1, k_x2 = jax.random.split(key, 3)

    input_size = 16    # state/observation dimension
    output_size = 4    # number of discrete actions
    params = init_qnetwork_params(k_params, input_size, output_size)

    # Tiny batch (per-env-step inference): single-block path.
    x = jax.random.normal(k_x1, (8, input_size), jnp.float32)
    out = jax.block_until_ready(qnetwork_forward(x, params))
    assert out.shape == (8, output_size)
    assert jnp.allclose(out, qnetwork_ref_bf16(x, params), atol=1e-3, rtol=1e-3)
    assert jnp.allclose(out, qnetwork_ref_f32(x, params), atol=5e-2, rtol=5e-2)

    # Larger batch with a small tile to exercise the multi-block pipelined path.
    x2 = jax.random.normal(k_x2, (48, input_size), jnp.float32)
    out2 = jax.block_until_ready(qnetwork_forward(x2, params, tile_b=16))
    assert out2.shape == (48, output_size)
    assert jnp.allclose(out2, qnetwork_ref_bf16(x2, params), atol=1e-3, rtol=1e-3)
    assert jnp.allclose(out2, qnetwork_ref_f32(x2, params), atol=5e-2, rtol=5e-2)

    print("KERNEL_OK")
</pallas_src>

<mosaic_0001>
module attributes {stable_mosaic.version = 11 : i64} {
  func.func @_qnetwork_kernel(%arg0: i32, %arg1: memref<8x16xf32, #tpu.memory_space<vmem>>, %arg2: memref<16x128xbf16, #tpu.memory_space<vmem>>, %arg3: memref<1x128xf32, #tpu.memory_space<vmem>>, %arg4: memref<128x128xbf16, #tpu.memory_space<vmem>>, %arg5: memref<1x128xf32, #tpu.memory_space<vmem>>, %arg6: memref<128x4xbf16, #tpu.memory_space<vmem>>, %arg7: memref<1x4xf32, #tpu.memory_space<vmem>>, %arg8: memref<8x4xf32, #tpu.memory_space<vmem>>) attributes {dimension_semantics = [#tpu.dimension_semantics<parallel>], iteration_bounds = array<i64: 1>, scalar_prefetch = 0 : i64, scratch_operands = 0 : i64, tpu.core_type = #tpu.core_type<tc>, window_params = [{transform_indices = @transform_0, window_bounds = array<i64: 8, 16>}, {pipeline_mode = #tpu.pipeline_mode<synchronous>, transform_indices = @transform_1, window_bounds = array<i64: 16, 128>}, {pipeline_mode = #tpu.pipeline_mode<synchronous>, transform_indices = @transform_2, window_bounds = array<i64: 1, 128>}, {pipeline_mode = #tpu.pipeline_mode<synchronous>, transform_indices = @transform_3, window_bounds = array<i64: 128, 128>}, {pipeline_mode = #tpu.pipeline_mode<synchronous>, transform_indices = @transform_4, window_bounds = array<i64: 1, 128>}, {pipeline_mode = #tpu.pipeline_mode<synchronous>, transform_indices = @transform_5, window_bounds = array<i64: 128, 4>}, {pipeline_mode = #tpu.pipeline_mode<synchronous>, transform_indices = @transform_6, window_bounds = array<i64: 1, 4>}, {transform_indices = @transform_7, window_bounds = array<i64: 8, 4>}]} {
    %c0 = arith.constant 0 : index
    %c0_0 = arith.constant 0 : index
    %0 = vector.load %arg1[%c0, %c0_0] : memref<8x16xf32, #tpu.memory_space<vmem>>, vector<8x16xf32>
    %1 = arith.truncf %0 : vector<8x16xf32> to vector<8x16xbf16>
    %c0_1 = arith.constant 0 : index
    %c0_2 = arith.constant 0 : index
    %2 = vector.load %arg2[%c0_1, %c0_2] : memref<16x128xbf16, #tpu.memory_space<vmem>>, vector<16x128xbf16>
    %cst = arith.constant dense<0.000000e+00> : vector<8x128xf32>
    %3 = tpu.matmul %1, %2, %cst {dimension_numbers = #tpu.dot_dimension_numbers<[1], [0], [0], [1], [0, 0, 1, 1], [], []>} : vector<8x16xbf16>, vector<16x128xbf16>, vector<8x128xf32> -> vector<8x128xf32>
    %c0_3 = arith.constant 0 : index
    %c0_4 = arith.constant 0 : index
    %4 = vector.load %arg3[%c0_3, %c0_4] : memref<1x128xf32, #tpu.memory_space<vmem>>, vector<1x128xf32>
    %5 = vector.broadcast %4 : vector<1x128xf32> to vector<8x128xf32>
    %6 = arith.addf %3, %5 : vector<8x128xf32>
    %cst_5 = arith.constant 0.000000e+00 : f32
    %7 = vector.broadcast %cst_5 : f32 to vector<8x128xf32>
    %8 = arith.maximumf %6, %7 : vector<8x128xf32>
    %9 = arith.truncf %8 : vector<8x128xf32> to vector<8x128xbf16>
    %c0_6 = arith.constant 0 : index
    %c0_7 = arith.constant 0 : index
    %10 = vector.load %arg4[%c0_6, %c0_7] : memref<128x128xbf16, #tpu.memory_space<vmem>>, vector<128x128xbf16>
    %cst_8 = arith.constant dense<0.000000e+00> : vector<8x128xf32>
    %11 = tpu.matmul %9, %10, %cst_8 {dimension_numbers = #tpu.dot_dimension_numbers<[1], [0], [0], [1], [0, 0, 1, 1], [], []>} : vector<8x128xbf16>, vector<128x128xbf16>, vector<8x128xf32> -> vector<8x128xf32>
    %c0_9 = arith.constant 0 : index
    %c0_10 = arith.constant 0 : index
    %12 = vector.load %arg5[%c0_9, %c0_10] : memref<1x128xf32, #tpu.memory_space<vmem>>, vector<1x128xf32>
    %13 = vector.broadcast %12 : vector<1x128xf32> to vector<8x128xf32>
    %14 = arith.addf %11, %13 : vector<8x128xf32>
    %cst_11 = arith.constant 0.000000e+00 : f32
    %15 = vector.broadcast %cst_11 : f32 to vector<8x128xf32>
    %16 = arith.maximumf %14, %15 : vector<8x128xf32>
    %17 = arith.truncf %16 : vector<8x128xf32> to vector<8x128xbf16>
    %c0_12 = arith.constant 0 : index
    %c0_13 = arith.constant 0 : index
    %18 = vector.load %arg6[%c0_12, %c0_13] : memref<128x4xbf16, #tpu.memory_space<vmem>>, vector<128x4xbf16>
    %cst_14 = arith.constant dense<0.000000e+00> : vector<8x4xf32>
    %19 = tpu.matmul %17, %18, %cst_14 {dimension_numbers = #tpu.dot_dimension_numbers<[1], [0], [0], [1], [0, 0, 1, 1], [], []>} : vector<8x128xbf16>, vector<128x4xbf16>, vector<8x4xf32> -> vector<8x4xf32>
    %c0_15 = arith.constant 0 : index
    %c0_16 = arith.constant 0 : index
    %20 = vector.load %arg7[%c0_15, %c0_16] : memref<1x4xf32, #tpu.memory_space<vmem>>, vector<1x4xf32>
    %21 = vector.broadcast %20 : vector<1x4xf32> to vector<8x4xf32>
    %22 = arith.addf %19, %21 : vector<8x4xf32>
    %c0_17 = arith.constant 0 : index
    %c0_18 = arith.constant 0 : index
    %23 = vector.load %arg8[%c0_17, %c0_18] : memref<8x4xf32, #tpu.memory_space<vmem>>, vector<8x4xf32>
    tpu.vector_store %arg8[%c0_17, %c0_18], %22 {strides = array<i32>} : memref<8x4xf32, #tpu.memory_space<vmem>>, vector<8x4xf32>,
    return
  }
  func.func @transform_0(%arg0: i32) -> (i32, i32) {
    %c0_i32 = arith.constant 0 : i32
    %c0_i32_0 = arith.constant 0 : i32
    return %arg0, %c0_i32 : i32, i32
  }
  func.func @transform_1(%arg0: i32) -> (i32, i32) {
    %c0_i32 = arith.constant 0 : i32
    %c0_i32_0 = arith.constant 0 : i32
    %c0_i32_1 = arith.constant 0 : i32
    return %c0_i32, %c0_i32_0 : i32, i32
  }
  func.func @transform_2(%arg0: i32) -> (i32, i32) {
    %c0_i32 = arith.constant 0 : i32
    %c0_i32_0 = arith.constant 0 : i32
    %c0_i32_1 = arith.constant 0 : i32
    return %c0_i32, %c0_i32_0 : i32, i32
  }
  func.func @transform_3(%arg0: i32) -> (i32, i32) {
    %c0_i32 = arith.constant 0 : i32
    %c0_i32_0 = arith.constant 0 : i32
    %c0_i32_1 = arith.constant 0 : i32
    return %c0_i32, %c0_i32_0 : i32, i32
  }
  func.func @transform_4(%arg0: i32) -> (i32, i32) {
    %c0_i32 = arith.constant 0 : i32
    %c0_i32_0 = arith.constant 0 : i32
    %c0_i32_1 = arith.constant 0 : i32
    return %c0_i32, %c0_i32_0 : i32, i32
  }
  func.func @transform_5(%arg0: i32) -> (i32, i32) {
    %c0_i32 = arith.constant 0 : i32
    %c0_i32_0 = arith.constant 0 : i32
    %c0_i32_1 = arith.constant 0 : i32
    return %c0_i32, %c0_i32_0 : i32, i32
  }
  func.func @transform_6(%arg0: i32) -> (i32, i32) {
    %c0_i32 = arith.constant 0 : i32
    %c0_i32_0 = arith.constant 0 : i32
    %c0_i32_1 = arith.constant 0 : i32
    return %c0_i32, %c0_i32_0 : i32, i32
  }
  func.func @transform_7(%arg0: i32) -> (i32, i32) {
    %c0_i32 = arith.constant 0 : i32
    %c0_i32_0 = arith.constant 0 : i32
    return %arg0, %c0_i32 : i32, i32
  }
}

</mosaic_0001>

<llo_original>
// kernel: tpu_custom_call.1
$region0: #{tpu_custom_call.1}
  #allocation0 [shape = 'u32[]', space=smem, size = 0x4, offset = 0x4, fixed_abs, tag = 'smem constant byte address 0x4 - core index']
  #allocation1 [shape = 'u32[72,128]{1,0:T(1,128)}', space=vmem, size = 0x9000, scoped, tag = 'internal scratch']
  %s0 = inlined_call_operand.hbm [shape: f32[8,16], index: 0, kind: input, shape index: {}]
  %s1 = inlined_call_operand.hbm [shape: bf16[16,128], index: 1, kind: input, shape index: {}]
  %s2 = inlined_call_operand.vmem [shape: f32[1,128], index: 2, kind: input, shape index: {}]
  %s3 = inlined_call_operand.vmem [shape: bf16[128,128], index: 3, kind: input, shape index: {}]
  %s4 = inlined_call_operand.vmem [shape: f32[1,128], index: 4, kind: input, shape index: {}]
  %s5 = inlined_call_operand.vmem [shape: bf16[128,4], index: 5, kind: input, shape index: {}]
  %s6 = inlined_call_operand.vmem [shape: f32[1,4], index: 6, kind: input, shape index: {}]
  %s7 = inlined_call_operand.vmem [shape: f32[8,4], index: 7, kind: output, shape index: {}]
  %s8 = sld [smem:[#allocation0]]
  $region46: #{tpu_custom_call.1} parent=0
    _
  %s10 = ssub.s32 1, %s8
  %s11 = scalar_select 0, %s10, %s8
  $region1: #{tpu_custom_call.1} parent=0
    #allocation2 [shape = 'u8[4096]{0}', space=vmem, size = 0x1000, scoped, tag = 'input window, operand 0, single buffered']
    #allocation3 [shape = 's32[1]{0}', space=sflag, size = 0x4, scoped, tag = 'scoped memory for tpu_custom_call.1']
    #allocation4 [shape = 'u8[4096]{0}', space=vmem, size = 0x1000, scoped, tag = 'input window, operand 1, single buffered']
    #allocation5 [shape = 's32[1]{0}', space=sflag, size = 0x4, scoped, tag = 'scoped memory for tpu_custom_call.1']
    %12 = vsyncpa [#allocation3], 0
    %13 = vsyncpa [#allocation5], 0
    // Predicated region
    $region2: #{tpu_custom_call.1} parent=1 // pred_check
      _
    $region3: #{tpu_custom_call.1} parent=1 // pred_check_branch
      %15 = sbr.rel (0) target = $region5
    $region4: #{tpu_custom_call.1} parent=1 // pred_region
      %17 = vsyncadd [#allocation3], 0
      %s19 = sshll.u32 %s0, 4
      %s20 = int_to_ptr.hbm [resolvable:$true] %s19
      %s21 = sshll.u32 [#allocation2], 4
      %s22 = int_to_ptr.vmem [resolvable:$true] %s21
      %24 = dma.hbm_to_vmem [thread:$0]  %s20, 128, %s22, [#allocation3]
    $region5: #{tpu_custom_call.1} parent=1 // pred_fallthru
      _
    // Predicated region
    $region6: #{tpu_custom_call.1} parent=1 // pred_check
      _
    $region7: #{tpu_custom_call.1} parent=1 // pred_check_branch
      %26 = sbr.rel (0) target = $region9
    $region8: #{tpu_custom_call.1} parent=1 // pred_region
      %28 = vsyncadd [#allocation5], 0
      %s29 = sshll.u32 %s1, 4
      %s30 = int_to_ptr.hbm [resolvable:$true] %s29
      %s31 = sshll.u32 [#allocation4], 4
      %s32 = int_to_ptr.vmem [resolvable:$true] %s31
      %37 = dma.hbm_to_vmem [thread:$0]  %s30, 128, %s32, [#allocation5], 64, 64, 4
    $region9: #{tpu_custom_call.1} parent=1 // pred_fallthru
      _
    // Predicated region
    $region10: #{tpu_custom_call.1} parent=1 // pred_check
      _
    $region11: #{tpu_custom_call.1} parent=1 // pred_check_branch
      %39 = sbr.rel (0) target = $region13
    $region12: #{tpu_custom_call.1} parent=1 // pred_region
      _
    $region13: #{tpu_custom_call.1} parent=1 // pred_fallthru
      _
    // Predicated region
    $region14: #{tpu_custom_call.1} parent=1 // pred_check
      _
    $region15: #{tpu_custom_call.1} parent=1 // pred_check_branch
      %41 = sbr.rel (0) target = $region17
    $region16: #{tpu_custom_call.1} parent=1 // pred_region
      _
    $region17: #{tpu_custom_call.1} parent=1 // pred_fallthru
      _
    // Predicated region
    $region18: #{tpu_custom_call.1} parent=1 // pred_check
      _
    $region19: #{tpu_custom_call.1} parent=1 // pred_check_branch
      %43 = sbr.rel (0) target = $region21
    $region20: #{tpu_custom_call.1} parent=1 // pred_region
      _
    $region21: #{tpu_custom_call.1} parent=1 // pred_fallthru
      _
    // Predicated region
    $region22: #{tpu_custom_call.1} parent=1 // pred_check
      _
    $region23: #{tpu_custom_call.1} parent=1 // pred_check_branch
      %45 = sbr.rel (0) target = $region25
    $region24: #{tpu_custom_call.1} parent=1 // pred_region
      _
    $region25: #{tpu_custom_call.1} parent=1 // pred_fallthru
      _
    // Predicated region
    $region26: #{tpu_custom_call.1} parent=1 // pred_check
      _
    $region27: #{tpu_custom_call.1} parent=1 // pred_check_branch
      %47 = sbr.rel (0) target = $region29
    $region28: #{tpu_custom_call.1} parent=1 // pred_region
      _
    $region29: #{tpu_custom_call.1} parent=1 // pred_fallthru
      _
    // Predicated region
    $region30: #{tpu_custom_call.1} parent=1 // pred_check
      _
    $region31: #{tpu_custom_call.1} parent=1 // pred_check_branch
      %49 = sbr.rel (0) target = $region33
    $region32: #{tpu_custom_call.1} parent=1 // pred_region
      %51 = dma.done [#allocation3], 128
    $region33: #{tpu_custom_call.1} parent=1 // pred_fallthru
      _
    // Predicated region
    $region34: #{tpu_custom_call.1} parent=1 // pred_check
      _
    $region35: #{tpu_custom_call.1} parent=1 // pred_check_branch
      %53 = sbr.rel (0) target = $region37
    $region36: #{tpu_custom_call.1} parent=1 // pred_region
      %55 = dma.done [#allocation5], 128
    $region37: #{tpu_custom_call.1} parent=1 // pred_fallthru
      _
    %v57 = vld [vmem:[#allocation2] sm:$0xff]
    %v58 = vpack.c.bf16 %v57, %v57
    %v59 = vld [vmem:[#allocation4] sm:$0xf]
    %v60 = vld [vmem:[#allocation4 + $0x4] sm:$0xf]
    %v61 = vld [vmem:[%s2] sm:$0x1]
    %v63 = vperm.slane %v61, 0
    %v67 = vunpack.c.l.b16 %v59
    %v68 = vunpack.c.l.b16 %v60
    %v69 = vpack.c.b16 %v68, %v67
    %vm71 = vcmask 130048
    %v73 = vsel %vm71, %v58, 0
    %75 = vmatpush.bf16.msra.mxu0 0
    %76 = vmatpush.bf16.msra.mxu0 0
    %77 = vmatpush.bf16.msra.mxu0 0
    %78 = vmatpush.bf16.msra.mxu0 0
    %79 = vmatpush.bf16.msra.mxu0 0
    %80 = vmatpush.bf16.msra.mxu0 0
    %81 = vmatpush.bf16.msra.mxu0 0
    %82 = vmatpush.bf16.msra.mxu0 %v69
    %83 = vmatmul.bf16.gmra.mxu0 %v73
    %v84 = vpop.f32.mrf.mxu0
    %v85 = vadd.f32 %v63, %v84
    %v86 = vpop.f32.mrf.mxu0
    %87 = vdwg.mxu0
    %v88 = vmax.f32 %v85, 0.0
    %v89 = vpack.c.bf16 %v88, %v88
    %v90 = vld [vmem:[%s3] sm:$0xf]
    %v91 = vld [vmem:[%s3 + $0x4] sm:$0xf]
    %v92 = vld [vmem:[%s3 + $0x8] sm:$0xf]
    %v93 = vld [vmem:[%s3 + $0xc] sm:$0xf]
    %v94 = vld [vmem:[%s3 + $0x10] sm:$0xf]
    %v95 = vld [vmem:[%s3 + $0x14] sm:$0xf]
    %v96 = vld [vmem:[%s3 + $0x18] sm:$0xf]
    %v97 = vld [vmem:[%s3 + $0x1c] sm:$0xf]
    %v98 = vld [vmem:[%s3 + $0x20] sm:$0xf]
    %v99 = vld [vmem:[%s3 + $0x24] sm:$0xf]
    %v100 = vld [vmem:[%s3 + $0x28] sm:$0xf]
    %v101 = vld [vmem:[%s3 + $0x2c] sm:$0xf]
    %v102 = vld [vmem:[%s3 + $0x30] sm:$0xf]
    %v103 = vld [vmem:[%s3 + $0x34] sm:$0xf]
    %v104 = vld [vmem:[%s3 + $0x38] sm:$0xf]
    %v105 = vld [vmem:[%s3 + $0x3c] sm:$0xf]
    %v106 = vld [vmem:[%s4] sm:$0x1]
    %v108 = vperm.slane %v106, 0
    %v126 = vunpack.c.l.b16 %v90
    %v127 = vunpack.c.l.b16 %v91
    %v128 = vunpack.c.l.b16 %v92
    %v129 = vunpack.c.l.b16 %v93
    %v130 = vunpack.c.l.b16 %v94
    %v131 = vunpack.c.l.b16 %v95
    %v132 = vunpack.c.l.b16 %v96
    %v133 = vunpack.c.l.b16 %v97
    %v134 = vunpack.c.l.b16 %v98
    %v135 = vunpack.c.l.b16 %v99
    %v136 = vunpack.c.l.b16 %v100
    %v137 = vunpack.c.l.b16 %v101
    %v138 = vunpack.c.l.b16 %v102
    %v139 = vunpack.c.l.b16 %v103
    %v140 = vunpack.c.l.b16 %v104
    %v141 = vunpack.c.l.b16 %v105
    %v142 = vpack.c.b16 %v127, %v126
    %v143 = vpack.c.b16 %v129, %v128
    %v144 = vpack.c.b16 %v131, %v130
    %v145 = vpack.c.b16 %v133, %v132
    %v146 = vpack.c.b16 %v135, %v134
    %v147 = vpack.c.b16 %v137, %v136
    %v148 = vpack.c.b16 %v139, %v138
    %v149 = vpack.c.b16 %v141, %v140
    %158 = vmatpush.bf16.msra.mxu0 %v149
    %159 = vmatpush.bf16.msra.mxu0 %v148
    %160 = vmatpush.bf16.msra.mxu0 %v147
    %161 = vmatpush.bf16.msra.mxu0 %v146
    %162 = vmatpush.bf16.msra.mxu0 %v145
    %163 = vmatpush.bf16.msra.mxu0 %v144
    %164 = vmatpush.bf16.msra.mxu0 %v143
    %165 = vmatpush.bf16.msra.mxu0 %v142
    %166 = vmatmul.bf16.gmra.mxu0 %v89
    %v167 = vpop.f32.mrf.mxu0
    %v168 = vadd.f32 %v108, %v167
    %v169 = vpop.f32.mrf.mxu0
    %170 = vdwg.mxu0
    %v171 = vmax.f32 %v168, 0.0
    %v172 = vpack.c.bf16 %v171, %v171
    %v173 = vld [vmem:[%s5] sm:$0xf]
    %v174 = vld [vmem:[%s5 + $0x4] sm:$0xf]
    %v175 = vld [vmem:[%s5 + $0x8] sm:$0xf]
    %v176 = vld [vmem:[%s5 + $0xc] sm:$0xf]
    %v177 = vld [vmem:[%s5 + $0x10] sm:$0xf]
    %v178 = vld [vmem:[%s5 + $0x14] sm:$0xf]
    %v179 = vld [vmem:[%s5 + $0x18] sm:$0xf]
    %v180 = vld [vmem:[%s5 + $0x1c] sm:$0xf]
    %v181 = vld [vmem:[%s5 + $0x20] sm:$0xf]
    %v182 = vld [vmem:[%s5 + $0x24] sm:$0xf]
    %v183 = vld [vmem:[%s5 + $0x28] sm:$0xf]
    %v184 = vld [vmem:[%s5 + $0x2c] sm:$0xf]
    %v185 = vld [vmem:[%s5 + $0x30] sm:$0xf]
    %v186 = vld [vmem:[%s5 + $0x34] sm:$0xf]
    %v187 = vld [vmem:[%s5 + $0x38] sm:$0xf]
    %v188 = vld [vmem:[%s5 + $0x3c] sm:$0xf]
    %v189 = vld [vmem:[%s6] sm:$0x1]
    %v191 = vperm.slane %v189, 0
    %v209 = vunpack.c.l.b16 %v173
    %v210 = vunpack.c.l.b16 %v174
    %v211 = vunpack.c.l.b16 %v175
    %v212 = vunpack.c.l.b16 %v176
    %v213 = vunpack.c.l.b16 %v177
    %v214 = vunpack.c.l.b16 %v178
    %v215 = vunpack.c.l.b16 %v179
    %v216 = vunpack.c.l.b16 %v180
    %v217 = vunpack.c.l.b16 %v181
    %v218 = vunpack.c.l.b16 %v182
    %v219 = vunpack.c.l.b16 %v183
    %v220 = vunpack.c.l.b16 %v184
    %v221 = vunpack.c.l.b16 %v185
    %v222 = vunpack.c.l.b16 %v186
    %v223 = vunpack.c.l.b16 %v187
    %v224 = vunpack.c.l.b16 %v188
    %v225 = vpack.c.b16 %v210, %v209
    %v226 = vpack.c.b16 %v212, %v211
    %v227 = vpack.c.b16 %v214, %v213
    %v228 = vpack.c.b16 %v216, %v215
    %v229 = vpack.c.b16 %v218, %v217
    %v230 = vpack.c.b16 %v220, %v219
    %v231 = vpack.c.b16 %v222, %v221
    %v232 = vpack.c.b16 %v224, %v223
    %241 = vmatpush.bf16.msra.mxu0 %v232
    %242 = vmatpush.bf16.msra.mxu0 %v231
    %243 = vmatpush.bf16.msra.mxu0 %v230
    %244 = vmatpush.bf16.msra.mxu0 %v229
    %245 = vmatpush.bf16.msra.mxu0 %v228
    %246 = vmatpush.bf16.msra.mxu0 %v227
    %247 = vmatpush.bf16.msra.mxu0 %v226
    %248 = vmatpush.bf16.msra.mxu0 %v225
    %249 = vmatmul.bf16.gmra.mxu0 %v172
    %v250 = vpop.f32.mrf.mxu0
    %v251 = vadd.f32 %v191, %v250
    %v252 = vpop.f32.mrf.mxu0
    %253 = vdwg.mxu0
    %vm254 = vcmask 31744
    %255 = vst.msk [vmem:[%s7] sm:$0xff] %vm254, %v251
    // Predicated region
    $region38: #{tpu_custom_call.1} parent=1 // pred_check
      _
    $region39: #{tpu_custom_call.1} parent=1 // pred_check_branch
      %257 = sbr.rel (0) target = $region41
    $region40: #{tpu_custom_call.1} parent=1 // pred_region
      _
    $region41: #{tpu_custom_call.1} parent=1 // pred_fallthru
      _
    // Predicated region
    $region42: #{tpu_custom_call.1} parent=1 // pred_check
      _
    $region43: #{tpu_custom_call.1} parent=1 // pred_check_branch
      %259 = sbr.rel (0) target = $region45
    $region44: #{tpu_custom_call.1} parent=1 // pred_region
      _
    $region45: #{tpu_custom_call.1} parent=1 // pred_fallthru
      _
    %260 = vsyncpa [#allocation3], 1
    %261 = vsyncpa [#allocation5], 1

</llo_original>
